<compile_context>
chip_gen: v7x
topology: tpu7x:2x2x1
jax: 0.10.0
libtpu: 0.0.40
codegen_flags: <defaults>
</compile_context>

<pallas_src>
import jax
import jax.numpy as jnp
from jax.experimental import pallas as pl
from jax.experimental.pallas import tpu as pltpu


def _patch_embed_kernel(p_ref, w_ref, pos_ref, o_ref):
    # p_ref:   (TM, K)   compute dtype -- TM = Bt * nP flattened patch rows
    # w_ref:   (K, TN)   compute dtype -- conv weight tile (K = C*P*P)
    # pos_ref: (TM, TN)  compute dtype -- positions[1:] + conv bias, tiled over Bt
    # o_ref:   (TM, TN)  final dtype (x.dtype)
    acc = jnp.dot(p_ref[...], w_ref[...], preferred_element_type=jnp.float32)
    o_ref[...] = (acc + pos_ref[...].astype(jnp.float32)).astype(o_ref.dtype)


def _tpu_hw_info():
    """(per-core VMEM bytes, # TensorCores behind one XLA device) — generation aware."""
    vmem = 64 * 1024 * 1024                       # conservative fallback (v7x-sized)
    try:
        vmem = int(pltpu.get_tpu_info().vmem_capacity_bytes)
    except Exception:
        pass
    kind = ""
    try:
        kind = jax.devices()[0].device_kind.lower()
    except Exception:
        pass
    # Chips whose XLA device spans 2 TensorCores (megacore v4/v5p, v7x); v5e/v6e: 1.
    num_cores = 2 if any(t in kind for t in ("v4", "v5p", "v7")) else 1
    return vmem, num_cores


def _choose_tiles(B, nP, K, Eout, *, in_bytes, out_bytes, vmem_budget, num_cores,
                  target_rows=1024):
    """Pick (Bt, TN): batch elements per grid step and the embedding-dim tile.

    Goals (in order):
      * blocks fit the scoped-VMEM budget (weight/pos single-buffered when
        grid-invariant, patches/output double-buffered),
      * at least 2 grid steps per TensorCore so the patch DMA of step i+1 hides
        behind the compute of step i,
      * row tile 16-sublane aligned (packed bf16) and large enough (~1024 rows)
        to amortize the per-step pipeline overhead.
    """
    desired_steps = max(2, 2 * num_cores)

    def vmem_bytes(bt, tn, bufs_wp):
        tm = bt * nP
        return (2 * tm * K * in_bytes             # patches block, double-buffered
                + bufs_wp * K * tn * in_bytes     # weight
                + bufs_wp * tm * tn * in_bytes    # positions tile
                + 2 * tm * tn * out_bytes)        # output block, double-buffered

    def aligned(mult):
        return [bt for bt in range(1, B + 1)
                if B % bt == 0 and (bt * nP) % mult == 0]

    cands = aligned(16) or aligned(8) or [1]
    fitting = [bt for bt in cands if vmem_bytes(bt, Eout, 1) <= vmem_budget]
    if not fitting:
        fitting = [min(cands)]     # smallest block we can form; may be tight but
                                   # never the old "Bt = B" blow-up.

    met = [bt for bt in fitting if B // bt >= desired_steps]
    if met:
        big = [bt for bt in met if bt * nP >= target_rows]
        Bt = min(big) if big else max(met)
    else:
        Bt = min(fitting)          # maximize batch steps; the E-split below adds more.

    # Second "parallel" grid axis over the embedding dim for small-batch shapes:
    # keeps both v7x TensorCores busy when the batch axis collapses.
    TN = Eout
    n_steps = B // Bt
    if n_steps < desired_steps and Eout % 256 == 0:
        for n_e in range(2, Eout // 256 + 1):
            if Eout % n_e == 0 and (Eout // n_e) % 256 == 0:
                TN = Eout // n_e
                if n_steps * n_e >= desired_steps:
                    break
    return Bt, TN


def patch_embedding(x, conv_w, conv_b, cls_token, positions, patch_size,
                    *, compute_dtype=jnp.bfloat16):
    """x: [B, C, H, W] -> [B, (H//P)*(W//P) + 1, E].  Matches the PyTorch
    PatchEmbedding.forward (strided conv as patch-matmul -> prepend cls ->
    add learned positions).  Output dtype == x.dtype."""
    B, C, H, W = x.shape
    P = patch_size
    E = conv_w.shape[0]
    nH, nW = H // P, W // P
    nP = nH * nW
    K = C * P * P
    out_dtype = x.dtype

    # Lane-pad the embedding dim only when it is not already a multiple of 128.
    Eout = E if E % 128 == 0 else ((E + 127) // 128) * 128

    vmem_phys, num_cores = _tpu_hw_info()
    vmem_limit = int(vmem_phys * 0.70)       # scoped VMEM requested from Mosaic
    vmem_budget = int(vmem_limit * 0.85)     # what the tile chooser plans against

    # im2col glue (stride==kernel Conv2d -> patch rows), materialized once by XLA
    # in the compute dtype; intentionally NOT fused into the kernel's input DMA.
    x_c = x.astype(compute_dtype)
    patches = x_c.reshape(B, C, nH, P, nW, P).transpose(0, 2, 4, 1, 3, 5)
    patches = patches.reshape(B * nP, K)

    # Weight (K, Eout); conv bias folded into the per-patch positions (f32 add,
    # then stored in the compute dtype and upcast again inside the kernel).
    w = conv_w.reshape(E, K).T.astype(compute_dtype)
    pos_patch = positions[1:].astype(jnp.float32) + conv_b[None, :].astype(jnp.float32)
    if Eout != E:
        w = jnp.pad(w, ((0, 0), (0, Eout - E)))
        pos_patch = jnp.pad(pos_patch, ((0, 0), (0, Eout - E)))
    pos_patch = pos_patch.astype(compute_dtype)

    in_bytes = jnp.dtype(compute_dtype).itemsize
    out_bytes = jnp.dtype(out_dtype).itemsize
    Bt, TN = _choose_tiles(B, nP, K, Eout, in_bytes=in_bytes, out_bytes=out_bytes,
                           vmem_budget=vmem_budget, num_cores=num_cores)
    TM = Bt * nP
    nM = B // Bt
    nE = Eout // TN
    pos_tile = jnp.broadcast_to(pos_patch[None], (Bt, nP, Eout)).reshape(TM, Eout)

    if nE == 1:
        # Weight & positions are grid-invariant -> single-buffer them (frees VMEM).
        w_spec = pl.BlockSpec((K, TN), lambda i, j: (0, j),
                              pipeline_mode=pl.Buffered(1))
        pos_spec = pl.BlockSpec((TM, TN), lambda i, j: (0, j),
                                pipeline_mode=pl.Buffered(1))
    else:
        w_spec = pl.BlockSpec((K, TN), lambda i, j: (0, j))
        pos_spec = pl.BlockSpec((TM, TN), lambda i, j: (0, j))

    out2d = pl.pallas_call(
        _patch_embed_kernel,
        out_shape=jax.ShapeDtypeStruct((B * nP, Eout), out_dtype),
        grid_spec=pltpu.PrefetchScalarGridSpec(
            num_scalar_prefetch=0,
            grid=(nM, nE),
            in_specs=[
                pl.BlockSpec((TM, K), lambda i, j: (i, 0)),   # patch rows (streamed)
                w_spec,                                       # weight
                pos_spec,                                     # positions + bias
            ],
            out_specs=pl.BlockSpec((TM, TN), lambda i, j: (i, j)),
        ),
        compiler_params=pltpu.CompilerParams(
            dimension_semantics=("parallel", "parallel"),
            vmem_limit_bytes=vmem_limit,
        ),
    )(patches, w, pos_tile)

    if Eout != E:
        out2d = out2d[:, :E]
    patch_rows = out2d.reshape(B, nP, E)          # already in out_dtype — no cast

    # cls row handled outside the kernel: (cls_token + positions[0]) broadcast.
    cls_row = (cls_token.reshape(E).astype(jnp.float32)
               + positions[0].astype(jnp.float32)).astype(out_dtype)
    cls_rows = jnp.broadcast_to(cls_row[None, None, :], (B, 1, E))
    # TODO(synk): one concat pass remains here (see header note).
    return jnp.concatenate([cls_rows, patch_rows], axis=1)


def _reference(x, conv_w, conv_b, cls_token, positions, patch_size):
    """Pure-JAX f32 reference matching the PyTorch module semantics."""
    B, C, H, W = x.shape
    P = patch_size
    E = conv_w.shape[0]
    nH, nW = H // P, W // P
    patches = x.reshape(B, C, nH, P, nW, P).transpose(0, 2, 4, 1, 3, 5)
    patches = patches.reshape(B, nH * nW, C * P * P)
    proj = patches @ conv_w.reshape(E, -1).T + conv_b[None, None, :]
    cls = jnp.broadcast_to(cls_token.reshape(1, 1, E), (B, 1, E))
    seq = jnp.concatenate([cls, proj], axis=1)
    return seq + positions[None, :, :]


if __name__ == "__main__":
    def run_case(B, C, IMG, P, E, compute_dtype, atol, rtol):
        nP = (IMG // P) ** 2
        key = jax.random.PRNGKey(0)
        kx, kw, kb, kc, kp = jax.random.split(key, 5)
        x = jax.random.normal(kx, (B, C, IMG, IMG), dtype=jnp.float32)
        conv_w = jax.random.normal(kw, (E, C, P, P), dtype=jnp.float32) * 0.02
        conv_b = jax.random.normal(kb, (E,), dtype=jnp.float32) * 0.02
        cls_token = jax.random.normal(kc, (1, 1, E), dtype=jnp.float32)
        positions = jax.random.normal(kp, (nP + 1, E), dtype=jnp.float32)

        out = patch_embedding(x, conv_w, conv_b, cls_token, positions, P,
                              compute_dtype=compute_dtype)
        out = jax.block_until_ready(out)
        ref = _reference(x, conv_w, conv_b, cls_token, positions, P)
        assert out.shape == (B, nP + 1, E), out.shape
        assert jnp.allclose(out, ref, atol=atol, rtol=rtol), "mismatch vs reference"

    # Small config consistent with the module: batch=2, channels=4, img=16, patch=4, emb=32
    # (exercises the lane-padded E path + single-buffered invariant operands).
    run_case(2, 4, 16, 4, 32, jnp.bfloat16, 2e-2, 2e-2)
    # E % 128 == 0 fast path (no pad / no slice) + embedding-dim grid split (B=1).
    run_case(1, 4, 32, 4, 512, jnp.bfloat16, 2e-2, 2e-2)
    # f32 escape hatch smoke test (MXU default precision may still round operands).
    run_case(2, 4, 16, 4, 32, jnp.float32, 1e-2, 1e-2)

    print("KERNEL_OK")
</pallas_src>

<mosaic_0001>
module attributes {stable_mosaic.version = 11 : i64} {
  func.func @_patch_embed_kernel(%arg0: i32, %arg1: i32, %arg2: memref<16x64xbf16, #tpu.memory_space<vmem>>, %arg3: memref<64x128xbf16, #tpu.memory_space<vmem>>, %arg4: memref<16x128xbf16, #tpu.memory_space<vmem>>, %arg5: memref<16x128xf32, #tpu.memory_space<vmem>>) attributes {dimension_semantics = [#tpu.dimension_semantics<parallel>, #tpu.dimension_semantics<parallel>], iteration_bounds = array<i64: 2, 1>, scalar_prefetch = 0 : i64, scratch_operands = 0 : i64, tpu.core_type = #tpu.core_type<tc>, window_params = [{transform_indices = @transform_0, window_bounds = array<i64: 16, 64>}, {pipeline_mode = #tpu.pipeline_mode<synchronous>, transform_indices = @transform_1, window_bounds = array<i64: 64, 128>}, {pipeline_mode = #tpu.pipeline_mode<synchronous>, transform_indices = @transform_2, window_bounds = array<i64: 16, 128>}, {transform_indices = @transform_3, window_bounds = array<i64: 16, 128>}]} {
    %c0 = arith.constant 0 : index
    %c0_0 = arith.constant 0 : index
    %0 = vector.load %arg2[%c0, %c0_0] : memref<16x64xbf16, #tpu.memory_space<vmem>>, vector<16x64xbf16>
    %c0_1 = arith.constant 0 : index
    %c0_2 = arith.constant 0 : index
    %1 = vector.load %arg3[%c0_1, %c0_2] : memref<64x128xbf16, #tpu.memory_space<vmem>>, vector<64x128xbf16>
    %cst = arith.constant dense<0.000000e+00> : vector<16x128xf32>
    %2 = tpu.matmul %0, %1, %cst {dimension_numbers = #tpu.dot_dimension_numbers<[1], [0], [0], [1], [0, 0, 1, 1], [], []>} : vector<16x64xbf16>, vector<64x128xbf16>, vector<16x128xf32> -> vector<16x128xf32>
    %c0_3 = arith.constant 0 : index
    %c0_4 = arith.constant 0 : index
    %3 = vector.load %arg4[%c0_3, %c0_4] : memref<16x128xbf16, #tpu.memory_space<vmem>>, vector<16x128xbf16>
    %4 = arith.extf %3 : vector<16x128xbf16> to vector<16x128xf32>
    %5 = arith.addf %2, %4 : vector<16x128xf32>
    %c0_5 = arith.constant 0 : index
    %c0_6 = arith.constant 0 : index
    %6 = vector.load %arg5[%c0_5, %c0_6] : memref<16x128xf32, #tpu.memory_space<vmem>>, vector<16x128xf32>
    tpu.vector_store %arg5[%c0_5, %c0_6], %5 {strides = array<i32>} : memref<16x128xf32, #tpu.memory_space<vmem>>, vector<16x128xf32>,
    return
  }
  func.func @transform_0(%arg0: i32, %arg1: i32) -> (i32, i32) {
    %c0_i32 = arith.constant 0 : i32
    %c0_i32_0 = arith.constant 0 : i32
    return %arg0, %c0_i32 : i32, i32
  }
  func.func @transform_1(%arg0: i32, %arg1: i32) -> (i32, i32) {
    %c0_i32 = arith.constant 0 : i32
    %c0_i32_0 = arith.constant 0 : i32
    return %c0_i32, %arg1 : i32, i32
  }
  func.func @transform_2(%arg0: i32, %arg1: i32) -> (i32, i32) {
    %c0_i32 = arith.constant 0 : i32
    %c0_i32_0 = arith.constant 0 : i32
    return %c0_i32, %arg1 : i32, i32
  }
  func.func @transform_3(%arg0: i32, %arg1: i32) -> (i32, i32) {
    %c0_i32 = arith.constant 0 : i32
    return %arg0, %arg1 : i32, i32
  }
}

</mosaic_0001>

<llo_original>
// kernel: tpu_custom_call.1
$region0: #{tpu_custom_call.1}
  #allocation0 [shape = 'u32[]', space=smem, size = 0x4, offset = 0x4, fixed_abs, tag = 'smem constant byte address 0x4 - core index']
  #allocation1 [shape = 'u32[144,128]{1,0:T(1,128)}', space=vmem, size = 0x12000, scoped, tag = 'internal scratch']
  %s0 = inlined_call_operand.hbm [shape: bf16[32,64], index: 0, kind: input, shape index: {}]
  %s1 = inlined_call_operand.hbm [shape: bf16[64,128], index: 1, kind: input, shape index: {}]
  %s2 = inlined_call_operand.hbm [shape: bf16[16,128], index: 2, kind: input, shape index: {}]
  %s3 = inlined_call_operand.hbm [shape: f32[32,128], index: 3, kind: output, shape index: {}]
  %s4 = sld [smem:[#allocation0]]
  $region57: #{tpu_custom_call.1} parent=0
    _
  %s6 = ssub.s32 1, %s4
  %s7 = scalar_select 0, %s6, %s4
  $region1: #{tpu_custom_call.1} parent=0
    #allocation2 [shape = 'u8[8192]{0}', space=vmem, size = 0x2000, scoped, tag = 'input window, operand 0']
    #allocation3 [shape = 's32[2]{0}', space=sflag, size = 0x8, scoped, tag = 'scoped memory for tpu_custom_call.1']
    #allocation4 [shape = 's32[2]{0}', space=sflag, size = 0x8, scoped, tag = 'scoped memory for tpu_custom_call.1']
    #allocation5 [shape = 'u8[16384]{0}', space=vmem, size = 0x4000, scoped, tag = 'input window, operand 1, single buffered']
    #allocation6 [shape = 's32[1]{0}', space=sflag, size = 0x4, scoped, tag = 'scoped memory for tpu_custom_call.1']
    #allocation7 [shape = 'u8[4096]{0}', space=vmem, size = 0x1000, scoped, tag = 'input window, operand 2, single buffered']
    #allocation8 [shape = 'u8[16384]{0}', space=vmem, size = 0x4000, scoped, tag = 'output window, operand 0']
    %8 = vsyncpa [#allocation3], 0
    %s9 = scalar_lea.sflag [#allocation3], 1
    %10 = vsyncpa %s9, 0
    %11 = vsyncpa [#allocation6], 0
    %12 = vsyncpa [#allocation4], 0
    %s13 = scalar_lea.sflag [#allocation4], 1
    %14 = vsyncpa %s13, 0
    loop: start=0, step=1, limit=4
    $region2: #{tpu_custom_call.1} parent=1 // loop_pre_header
      _
    $region3: #{tpu_custom_call.1} parent=1 // loop_header
      %s16 = sphi 0, %s20
      %p17 = scmp.ge.s32.totalorder %s16, 4
      %s23 = sphi 0, %s35
      %s24 = sphi 0, %s31
      %s25 = sphi 0, %s23
      %s26 = sphi 0, %s24
      %s27 = sphi 0, %s25
      %s28 = sphi 0, %s26
      %s38 = sphi 0, %s40
      %s41 = sphi 0, %s38
      %s42 = sphi 0, %s41
      %s58 = sphi 0, %s42
      %s64 = sphi 0, %s66
      %s67 = sphi 0, %s64
      %s68 = sphi 0, %s67
      %s84 = sphi 0, %s68
      %s90 = sphi 0, %s92
      %s93 = sphi 0, %s90
      %s94 = sphi 0, %s93
      %s110 = sphi 0, %s94
      %s118 = sphi 0, %s120
      %s121 = sphi 0, %s118
      %s122 = sphi 0, %s121
      %s138 = sphi 0, %s122
    $region4: #{tpu_custom_call.1} parent=1 // loop_header_branch
      %19 = sbr.rel (%p17) target = $region8
    $region5: #{tpu_custom_call.1} parent=1 // loop_body
      %s21 = ssub.s32 %s16, 1
      %s22 = ssub.s32 %s16, 2
      %s29 = sadd.s32 1, %s24
      %p30 = scmp.ge.s32.totalorder %s29, 1
      %s31 = scalar_select %p30, 0, %s29
      %s32 = sadd.s32 1, %s23
      %s33 = scalar_select %p30, %s32, %s23
      %p34 = scmp.ge.s32.totalorder %s33, 2
      %s35 = scalar_select %p34, 0, %s33
      %s36 = ssub.s32 %s23, %s35
      %p37 = scmp.eq.s32.totalorder %s36, 0
      %s39 = sadd.s32 %s38, 1
      %s40 = scalar_select %p37, %s38, %s39
      %p43 = pneg %p37
      %p44 = scmp.eq.s32.totalorder %s16, 1
      %p45 = por %p43, %p44
      %p46 = scmp.ne.s32.totalorder %s38, %s41
      %p47 = scmp.eq.s32.totalorder %s16, 0
      %p48 = por %p46, %p47
      %p49 = scmp.ne.s32.totalorder %s38, %s41
      %p50 = scmp.eq.s32.totalorder %s21, 1
      %p51 = por %p49, %p50
      %p52 = scmp.ne.s32.totalorder %s41, %s42
      %p53 = scmp.eq.s32.totalorder %s21, 0
      %p54 = por %p52, %p53
      %p55 = scmp.ne.s32.totalorder %s41, %s42
      %p56 = scmp.eq.s32.totalorder %s22, 1
      %p57 = por %p55, %p56
      %p59 = scmp.ne.s32.totalorder %s42, %s58
      %p60 = scmp.eq.s32.totalorder %s22, 0
      %p61 = por %p59, %p60
      %s62 = ssub.s32 %s24, %s31
      %p63 = scmp.eq.s32.totalorder %s62, 0
      %s65 = sadd.s32 %s64, 1
      %s66 = scalar_select %p63, %s64, %s65
      %p69 = pneg %p63
      %p70 = scmp.eq.s32.totalorder %s16, 1
      %p71 = por %p69, %p70
      %p72 = scmp.ne.s32.totalorder %s64, %s67
      %p73 = scmp.eq.s32.totalorder %s16, 0
      %p74 = por %p72, %p73
      %p75 = scmp.ne.s32.totalorder %s64, %s67
      %p76 = scmp.eq.s32.totalorder %s21, 1
      %p77 = por %p75, %p76
      %p78 = scmp.ne.s32.totalorder %s67, %s68
      %p79 = scmp.eq.s32.totalorder %s21, 0
      %p80 = por %p78, %p79
      %p81 = scmp.ne.s32.totalorder %s67, %s68
      %p82 = scmp.eq.s32.totalorder %s22, 1
      %p83 = por %p81, %p82
      %p85 = scmp.ne.s32.totalorder %s68, %s84
      %p86 = scmp.eq.s32.totalorder %s22, 0
      %p87 = por %p85, %p86
      %s88 = ssub.s32 %s24, %s31
      %p89 = scmp.eq.s32.totalorder %s88, 0
      %s91 = sadd.s32 %s90, 1
      %s92 = scalar_select %p89, %s90, %s91
      %p95 = pneg %p89
      %p96 = scmp.eq.s32.totalorder %s16, 1
      %p97 = por %p95, %p96
      %p98 = scmp.ne.s32.totalorder %s90, %s93
      %p99 = scmp.eq.s32.totalorder %s16, 0
      %p100 = por %p98, %p99
      %p101 = scmp.ne.s32.totalorder %s90, %s93
      %p102 = scmp.eq.s32.totalorder %s21, 1
      %p103 = por %p101, %p102
      %p104 = scmp.ne.s32.totalorder %s93, %s94
      %p105 = scmp.eq.s32.totalorder %s21, 0
      %p106 = por %p104, %p105
      %p107 = scmp.ne.s32.totalorder %s93, %s94
      %p108 = scmp.eq.s32.totalorder %s22, 1
      %p109 = por %p107, %p108
      %p111 = scmp.ne.s32.totalorder %s94, %s110
      %p112 = scmp.eq.s32.totalorder %s22, 0
      %p113 = por %p111, %p112
      %s114 = ssub.s32 %s23, %s35
      %s115 = ssub.s32 %s24, %s31
      %s116 = sor.u32 %s114, %s115
      %p117 = scmp.eq.s32.totalorder %s116, 0
      %s119 = sadd.s32 %s118, 1
      %s120 = scalar_select %p117, %s118, %s119
      %p123 = pneg %p117
      %p124 = scmp.eq.s32.totalorder %s16, 1
      %p125 = por %p123, %p124
      %p126 = scmp.ne.s32.totalorder %s118, %s121
      %p127 = scmp.eq.s32.totalorder %s16, 0
      %p128 = por %p126, %p127
      %p129 = scmp.ne.s32.totalorder %s118, %s121
      %p130 = scmp.eq.s32.totalorder %s21, 1
      %p131 = por %p129, %p130
      %p132 = scmp.ne.s32.totalorder %s121, %s122
      %p133 = scmp.eq.s32.totalorder %s21, 0
      %p134 = por %p132, %p133
      %p135 = scmp.ne.s32.totalorder %s121, %s122
      %p136 = scmp.eq.s32.totalorder %s22, 1
      %p137 = por %p135, %p136
      %p139 = scmp.ne.s32.totalorder %s122, %s138
      %p140 = scmp.eq.s32.totalorder %s22, 0
      %p141 = por %p139, %p140
      %p142 = scmp.le.s32.totalorder 1, %s16
      %p143 = scmp.lt.s32.totalorder %s16, 3
      %p144 = pnand %p142, %p143
      %p145 = pneg %p144
      // Predicated region
      $region9: #{tpu_custom_call.1} parent=5 // pred_check
        _
      $region10: #{tpu_custom_call.1} parent=5 // pred_check_branch
        %147 = sbr.rel (%p144) target = $region12
      $region11: #{tpu_custom_call.1} parent=5 // pred_region
        %s148 = ssub.s32 %s16, 1
        // Predicated region
        $region13: #{tpu_custom_call.1} parent=11 // pred_check
          %p149 = pneg %p80
        $region14: #{tpu_custom_call.1} parent=11 // pred_check_branch
          %151 = sbr.rel (%p149) target = $region16
        $region15: #{tpu_custom_call.1} parent=11 // pred_region
          %s153 = ssub.s32 512, 512
          %154 = vsyncadd [#allocation6], %s153
          %s155 = smul.addr %s26, 64
          %s156 = scalar_lea.hbm %s1, %s155
          %s157 = sshll.u32 [#allocation5], 4
          %s158 = int_to_ptr.vmem [resolvable:$true] %s157
          %163 = dma.hbm_to_vmem [thread:$0]  %s156, 512, %s158, [#allocation6], 64, 64, 4
        $region16: #{tpu_custom_call.1} parent=11 // pred_fallthru
          _
        // Predicated region
        $region17: #{tpu_custom_call.1} parent=11 // pred_check
          %p164 = pneg %p106
        $region18: #{tpu_custom_call.1} parent=11 // pred_check_branch
          %166 = sbr.rel (%p164) target = $region20
        $region19: #{tpu_custom_call.1} parent=11 // pred_region
          %s168 = ssub.s32 128, 128
          %169 = vsyncadd [#allocation6], %s168
          %s170 = smul.addr %s26, 64
          %s171 = scalar_lea.hbm %s2, %s170
          %s172 = sshll.u32 [#allocation7], 4
          %s173 = int_to_ptr.vmem [resolvable:$true] %s172
          %178 = dma.hbm_to_vmem [thread:$0]  %s171, 128, %s173, [#allocation6], 64, 64, 4
        $region20: #{tpu_custom_call.1} parent=11 // pred_fallthru
          _
      $region12: #{tpu_custom_call.1} parent=5 // pred_fallthru
        _
      %p179 = scmp.lt.s32.totalorder %s16, 2
      // Predicated region
      $region21: #{tpu_custom_call.1} parent=5 // pred_check
        %p180 = pneg %p179
      $region22: #{tpu_custom_call.1} parent=5 // pred_check_branch
        %182 = sbr.rel (%p180) target = $region24
      $region23: #{tpu_custom_call.1} parent=5 // pred_region
        // Predicated region
        $region25: #{tpu_custom_call.1} parent=23 // pred_check
          %p183 = pneg %p48
        $region26: #{tpu_custom_call.1} parent=23 // pred_check_branch
          %185 = sbr.rel (%p183) target = $region28
        $region27: #{tpu_custom_call.1} parent=23 // pred_region
          %s186 = sand.u32 %s38, 1
          %s187 = scalar_lea.sflag [#allocation3], %s186
          %s188 = sand.u32 %s38, 1
          %s189 = smul.addr %s188, 8
          %s190 = scalar_lea.vmem [#allocation2], %s189
          %s191 = smul.u32 2, %s23
          %s193 = ssub.s32 128, 128
          %194 = vsyncadd %s187, %s193
          %s195 = smul.addr %s191, 64
          %s196 = scalar_lea.hbm %s0, %s195
          %s197 = sshll.u32 %s190, 4
          %s198 = int_to_ptr.vmem [resolvable:$true] %s197
          %203 = dma.hbm_to_vmem [thread:$0]  %s196, 128, %s198, %s187, 64, 64, 4
        $region28: #{tpu_custom_call.1} parent=23 // pred_fallthru
          _
      $region24: #{tpu_custom_call.1} parent=5 // pred_fallthru
        _
      %p204 = scmp.le.s32.totalorder 1, %s16
      %p205 = scmp.lt.s32.totalorder %s16, 3
      %p206 = pnand %p204, %p205
      %p207 = pneg %p206
      // Predicated region
      $region29: #{tpu_custom_call.1} parent=5 // pred_check
        _
      $region30: #{tpu_custom_call.1} parent=5 // pred_check_branch
        %209 = sbr.rel (%p206) target = $region32
      $region31: #{tpu_custom_call.1} parent=5 // pred_region
        %s210 = ssub.s32 %s16, 1
        %s211 = sand.u32 %s41, 1
        %s212 = scalar_lea.sflag [#allocation3], %s211
        %s213 = sand.u32 %s41, 1
        %s214 = smul.addr %s213, 8
        %s215 = scalar_lea.vmem [#allocation2], %s214
        // Predicated region
        $region33: #{tpu_custom_call.1} parent=31 // pred_check
          %p216 = pneg %p54
        $region34: #{tpu_custom_call.1} parent=31 // pred_check_branch
          %218 = sbr.rel (%p216) target = $region36
        $region35: #{tpu_custom_call.1} parent=31 // pred_region
          %219 = dma.done %s212, 128
        $region36: #{tpu_custom_call.1} parent=31 // pred_fallthru
          _
        // Predicated region
        $region37: #{tpu_custom_call.1} parent=31 // pred_check
          %p220 = pneg %p80
        $region38: #{tpu_custom_call.1} parent=31 // pred_check_branch
          %222 = sbr.rel (%p220) target = $region40
        $region39: #{tpu_custom_call.1} parent=31 // pred_region
          %223 = dma.done [#allocation6], 512
        $region40: #{tpu_custom_call.1} parent=31 // pred_fallthru
          _
        // Predicated region
        $region41: #{tpu_custom_call.1} parent=31 // pred_check
          %p224 = pneg %p106
        $region42: #{tpu_custom_call.1} parent=31 // pred_check_branch
          %226 = sbr.rel (%p224) target = $region44
        $region43: #{tpu_custom_call.1} parent=31 // pred_region
          %227 = dma.done [#allocation6], 128
        $region44: #{tpu_custom_call.1} parent=31 // pred_fallthru
          _
        %s228 = sand.u32 %s41, 1
        %s229 = scalar_lea.sflag [#allocation3], %s228
        %s230 = sand.u32 %s41, 1
        %s231 = smul.addr %s230, 8
        %s232 = scalar_lea.vmem [#allocation2], %s231
        %p233 = pneg %p54
        %p234 = pneg %p51
        %p235 = pneg %p80
        %p236 = pneg %p77
        %p237 = pneg %p106
        %p238 = pneg %p103
        %p239 = pneg %p134
        %p240 = pneg %p131
        %s241 = sand.u32 %s121, 1
        %s242 = scalar_lea.sflag [#allocation4], %s241
        %s243 = sand.u32 %s121, 1
        %s244 = smul.addr %s243, 16
        %s245 = scalar_lea.vmem [#allocation8], %s244
        %s246 = smul.u32 2, %s25
        %s247 = smul.u32 2, %s25
        %v249 = vld [vmem:[%s215] sm:$0xf]
        %v250 = vld [vmem:[%s215 + $0x4] sm:$0xf]
        %v251 = vld [vmem:[#allocation5] sm:$0xf]
        %v252 = vld [vmem:[#allocation5 + $0x4] sm:$0xf]
        %v253 = vld [vmem:[#allocation5 + $0x8] sm:$0xf]
        %v254 = vld [vmem:[#allocation5 + $0xc] sm:$0xf]
        %v255 = vld [vmem:[#allocation5 + $0x10] sm:$0xf]
        %v256 = vld [vmem:[#allocation5 + $0x14] sm:$0xf]
        %v257 = vld [vmem:[#allocation5 + $0x18] sm:$0xf]
        %v258 = vld [vmem:[#allocation5 + $0x1c] sm:$0xf]
        %v259 = vld [vmem:[#allocation7] sm:$0xf]
        %v260 = vld [vmem:[#allocation7 + $0x4] sm:$0xf]
        %v261 = vunpack.c.l.bf16 %v259
        %v262 = vunpack.c.l.bf16 %v260
        %v265 = vunpack.c.l.b16 %v249
        %v266 = vunpack.c.l.b16 %v250
        %v267 = vpack.c.b16 %v266, %v265
        %v276 = vunpack.c.l.b16 %v251
        %v277 = vunpack.c.l.b16 %v252
        %v278 = vunpack.c.l.b16 %v253
        %v279 = vunpack.c.l.b16 %v254
        %v280 = vunpack.c.l.b16 %v255
        %v281 = vunpack.c.l.b16 %v256
        %v282 = vunpack.c.l.b16 %v257
        %v283 = vunpack.c.l.b16 %v258
        %v284 = vpack.c.b16 %v277, %v276
        %v285 = vpack.c.b16 %v279, %v278
        %v286 = vpack.c.b16 %v281, %v280
        %v287 = vpack.c.b16 %v283, %v282
        %vm292 = vcmask 523264
        %v294 = vsel %vm292, %v267, 0
        %296 = vmatprep.subr.bf16.mxu0 0
        %297 = vmatpush1.bf16.msra.mxu0 %v284
        %298 = vmatprep.subr.bf16.mxu0 0
        %299 = vmatpush1.bf16.msra.mxu0 %v285
        %300 = vmatprep.subr.bf16.mxu0 0
        %301 = vmatpush1.bf16.msra.mxu0 %v286
        %302 = vmatprep.subr.bf16.mxu0 0
        %303 = vmatpush1.bf16.msra.mxu0 %v287
        %304 = vmatprep.subr.bf16.mxu0 0
        %305 = vmatpush1.bf16.msra.mxu0 0
        %306 = vmatprep.subr.bf16.mxu0 0
        %307 = vmatpush1.bf16.msra.mxu0 0
        %308 = vmatprep.subr.bf16.mxu0 0
        %309 = vmatpush1.bf16.msra.mxu0 0
        %310 = vmatprep.subr.bf16.mxu0 0
        %311 = vmatpush1.bf16.msra.mxu0 0
        %312 = vmatprep.subr.bf16.mxu0 0
        %313 = vmatpush1.bf16.msra.mxu0 0
        %314 = vmatprep.subr.bf16.mxu0 0
        %315 = vmatpush1.bf16.msra.mxu0 0
        %316 = vmatprep.subr.bf16.mxu0 0
        %317 = vmatpush1.bf16.msra.mxu0 0
        %318 = vmatprep.subr.bf16.mxu0 0
        %319 = vmatpush1.bf16.msra.mxu0 0
        %320 = vmatprep.subr.bf16.mxu0 0
        %321 = vmatpush1.bf16.msra.mxu0 0
        %322 = vmatprep.subr.bf16.mxu0 0
        %323 = vmatpush1.bf16.msra.mxu0 0
        %324 = vmatprep.subr.bf16.mxu0 0
        %325 = vmatpush1.bf16.msra.mxu0 0
        %326 = vmatprep.subr.bf16.mxu0 0
        %327 = vmatpush1.bf16.msra.mxu0 0
        %328 = vmatprep.mubr.bf16.mxu0 0
        %329 = vmatmul.mubr.bf16.gmra.mrb[0].mxu0 %v294
        %v330 = vpop.f32.mrb[0].mxu0
        %v331 = vadd.f32 %v261, %v330
        %v332 = vpop.f32.mrb[0].mxu0
        %v333 = vpop.f32.mrb[0].mxu0
        %v334 = vadd.f32 %v262, %v333
        %v335 = vpop.f32.mrb[0].mxu0
        %336 = vdwg.mxu0
        %337 = vst [vmem:[%s245] sm:$0xff] %v331
        %338 = vst [vmem:[%s245 + $0x8] sm:$0xff] %v334
        %s339 = sand.u32 %s121, 1
        %s340 = scalar_lea.sflag [#allocation4], %s339
        %s341 = sand.u32 %s121, 1
        %s342 = smul.addr %s341, 16
        %s343 = scalar_lea.vmem [#allocation8], %s342
        // Predicated region
        $region45: #{tpu_custom_call.1} parent=31 // pred_check
          %p344 = pneg %p131
        $region46: #{tpu_custom_call.1} parent=31 // pred_check_branch
          %346 = sbr.rel (%p344) target = $region48
        $region47: #{tpu_custom_call.1} parent=31 // pred_region
          %s347 = smul.u32 2, %s25
          %s349 = ssub.s32 256, 256
          %350 = vsyncadd %s340, %s349
          %s351 = sadd.s32 %s26, %s347
          %s352 = smul.addr %s351, 128
          %s353 = scalar_lea.hbm %s3, %s352
          %s354 = sshll.u32 %s343, 4
          %s355 = int_to_ptr.vmem [resolvable:$true] %s354
          %360 = dma.vmem_to_hbm [thread:$0]  %s355, 256, %s353, %s340, 128, 128, 8
        $region48: #{tpu_custom_call.1} parent=31 // pred_fallthru
          _
      $region32: #{tpu_custom_call.1} parent=5 // pred_fallthru
        _
      %p361 = scmp.le.s32.totalorder 2, %s16
      // Predicated region
      $region49: #{tpu_custom_call.1} parent=5 // pred_check
        %p362 = pneg %p361
      $region50: #{tpu_custom_call.1} parent=5 // pred_check_branch
        %364 = sbr.rel (%p362) target = $region52
      $region51: #{tpu_custom_call.1} parent=5 // pred_region
        %s365 = ssub.s32 %s16, 2
        // Predicated region
        $region53: #{tpu_custom_call.1} parent=51 // pred_check
          %p366 = pneg %p137
        $region54: #{tpu_custom_call.1} parent=51 // pred_check_branch
          %368 = sbr.rel (%p366) target = $region56
        $region55: #{tpu_custom_call.1} parent=51 // pred_region
          %s369 = sand.u32 %s122, 1
          %s370 = scalar_lea.sflag [#allocation4], %s369
          %s371 = sand.u32 %s122, 1
          %s372 = smul.addr %s371, 16
          %s373 = scalar_lea.vmem [#allocation8], %s372
          %374 = dma.done %s370, 256
        $region56: #{tpu_custom_call.1} parent=51 // pred_fallthru
          _
      $region52: #{tpu_custom_call.1} parent=5 // pred_fallthru
        _
    $region6: #{tpu_custom_call.1} parent=1 // loop_footer
      %s20 = sadd.s32 1, %s16
    $region7: #{tpu_custom_call.1} parent=1 // loop_footer_branch
      %15 = sbr.rel target = $region3
    $region8: #{tpu_custom_call.1} parent=1 // loop_exit
      _
    %375 = vsyncpa [#allocation3], 1
    %s376 = scalar_lea.sflag [#allocation3], 1
    %377 = vsyncpa %s376, 1
    %378 = vsyncpa [#allocation6], 1
    %379 = vsyncpa [#allocation4], 1
    %s380 = scalar_lea.sflag [#allocation4], 1
    %381 = vsyncpa %s380, 1

</llo_original>
